<compile_context>
chip_gen: v7x
topology: tpu7x:2x2x1
jax: 0.10.0
libtpu: 0.0.40
codegen_flags: <defaults>
</compile_context>

<pallas_src>
import math
from functools import partial

import jax
import jax.numpy as jnp
from jax import lax
from jax.experimental import pallas as pl
from jax.experimental.pallas import tpu as pltpu


def _erf(x):
    # Abramowitz & Stegun 7.1.26, |err| <= 1.5e-7 — matches PyTorch's exact
    # (non-tanh) GELU well under the test tolerance without relying on an erf
    # lowering inside Mosaic.
    a1, a2, a3, a4, a5 = 0.254829592, -0.284496736, 1.421413741, -1.453152027, 1.061405429
    p = 0.3275911
    s = jnp.where(x >= 0.0, 1.0, -1.0)
    ax = jnp.abs(x)
    # TODO(synk): pl.reciprocal(1 + p*ax, approx=True) would move this divide to
    # the EUP; kept exact since the epilogue is no longer the bottleneck.
    t = 1.0 / (1.0 + p * ax)
    poly = ((((a5 * t + a4) * t + a3) * t + a2) * t + a1) * t
    return s * (1.0 - poly * jnp.exp(-ax * ax))


def _gelu_exact(x):
    return 0.5 * x * (1.0 + _erf(x * (1.0 / math.sqrt(2.0))))


def _conv3x3_bn_gelu_cm(x_cm, w_flat, bias, left_ok, right_ok, W):
    """3x3 same-pad conv + folded BN + exact GELU, channel-major / lane-dense.

    x_cm    : (C_in, M)       activations, M = H*W flattened row-major (lane dim)
    w_flat  : (C_out, 9*C_in) weights, K ordered (kh, kw, c_in); BN scale folded
    bias    : (C_out, 1)      folded conv bias + BN shift
    left_ok : (1, M) bool     source column j-1 >= 0   (mask for kw == 0 taps)
    right_ok: (1, M) bool     source column j+1 <= W-1 (mask for kw == 2 taps)
    returns : (C_out, M) lane-dense activations
    """
    C, M = x_cm.shape
    P = W + 1                                   # covers the largest |flat offset|
    z = jnp.zeros((C, P), jnp.float32)
    xe = jnp.concatenate([z, x_cm, z], axis=1)  # (C, M + 2P): zero past both ends

    taps = []
    for kh in range(3):
        for kw in range(3):
            off = (kh - 1) * W + (kw - 1)
            # t[m] = x[m + off]; reads past either end are zero (== vertical pad)
            t = xe[:, P + off:P + off + M]
            if kw == 0:                          # source col j-1: mask j == 0
                t = jnp.where(left_ok, t, 0.0)
            elif kw == 2:                        # source col j+1: mask j == W-1
                t = jnp.where(right_ok, t, 0.0)
            taps.append(t)
    patches = jnp.concatenate(taps, axis=0)      # (9*C_in, M), sublane-stacked
    y = jnp.dot(w_flat, patches, preferred_element_type=jnp.float32)  # (C_out, M)
    return _gelu_exact(y + bias)


def unet_down_kernel(x_ref, w1_ref, b1_ref, w2_ref, b2_ref, o_ref, *, H, W):
    # x_ref : (bt, Cin, H*W)   NCHW input, spatial flattened (lane-dense)
    # w1_ref: (Cout, 9*Cin)    conv1 im2col weights (BN1 scale folded in)
    # b1_ref: (Cout, 1)        conv1 bias + BN1 shift
    # w2_ref: (Cout, 9*Cout)   conv2 im2col weights (BN2 scale folded in)
    # b2_ref: (Cout, 1)
    # o_ref : (bt, Cout, H*W)  2x2 window maxes at (even i, even j); wrapper slices
    bt = x_ref.shape[0]
    Cout = w1_ref.shape[0]
    M = H * W

    col = lax.broadcasted_iota(jnp.int32, (1, M), 1) % W
    left_ok = col >= 1
    right_ok = col <= W - 2

    w1 = w1_ref[...]
    b1 = b1_ref[...]
    w2 = w2_ref[...]
    b2 = b2_ref[...]
    zpool = jnp.zeros((Cout, W + 1), jnp.float32)

    for b in range(bt):                          # static unroll, bt <= 8
        x1 = _conv3x3_bn_gelu_cm(x_ref[b], w1, b1, left_ok, right_ok, W)
        x2 = _conv3x3_bn_gelu_cm(x1, w2, b2, left_ok, right_ok, W)

        # 2x2 max pool, fully in-register: max of the 4 shifted copies.  The
        # window max for output pixel (i/2, j/2) sits at flat position i*W + j
        # with i, j even; the whole lane-dense slab is stored and the wrapper
        # extracts the even/even positions with a pure strided slice.
        xpe = jnp.concatenate([x2, zpool], axis=1)          # (Cout, M + W + 1)
        v = jnp.maximum(jnp.maximum(x2, xpe[:, 1:M + 1]),
                        jnp.maximum(xpe[:, W:W + M], xpe[:, W + 1:W + 1 + M]))
        o_ref[b] = v


def unet_down(x_nchw, params, eps=1e-5):
    (w1, b1, g1, be1, rm1, rv1,
     w2, b2, g2, be2, rm2, rv2) = params

    x = x_nchw.astype(jnp.float32)
    B, Cin, H, W = x.shape
    Cout = w1.shape[0]
    assert H % 2 == 0 and W % 2 == 0, "MaxPool2d(2) path assumes even H, W"

    # fold eval-mode BatchNorm: scale into the weights, shift (+conv bias) into
    # one per-channel bias; weights in channel-major im2col form (Cout, 9*Cin)
    # with K ordered (kh, kw, cin) to match the kernel's tap stacking order.
    s1 = (g1 / jnp.sqrt(rv1 + eps)).astype(jnp.float32)
    s2 = (g2 / jnp.sqrt(rv2 + eps)).astype(jnp.float32)
    w1m = (jnp.transpose(w1, (0, 2, 3, 1)).astype(jnp.float32)
           .reshape(Cout, 9 * Cin) * s1[:, None])
    w2m = (jnp.transpose(w2, (0, 2, 3, 1)).astype(jnp.float32)
           .reshape(Cout, 9 * Cout) * s2[:, None])
    bb1 = ((b1 - rm1) * s1 + be1).reshape(Cout, 1).astype(jnp.float32)
    bb2 = ((b2 - rm2) * s2 + be2).reshape(Cout, 1).astype(jnp.float32)

    # free reshape: the kernel consumes NCHW directly (no wrapper transpose/pad)
    x3 = x.reshape(B, Cin, H * W)

    # batch tiling: bt images per grid step (unrolled in-kernel); keep >= 2 grid
    # blocks whenever B >= 2 so "parallel" can shard across both v7x TensorCores.
    bt = 1
    if B > 1:
        cap = max(1, min(8, B // 2))
        for cand in range(cap, 0, -1):
            if B % cand == 0:
                bt = cand
                break
    nb = B // bt

    kern = partial(unet_down_kernel, H=H, W=W)
    out = pl.pallas_call(
        kern,
        out_shape=jax.ShapeDtypeStruct((B, Cout, H * W), jnp.float32),
        grid=(nb,),
        in_specs=[
            pl.BlockSpec((bt, Cin, H * W), lambda i: (i, 0, 0)),
            pl.BlockSpec((Cout, 9 * Cin), lambda i: (0, 0)),
            pl.BlockSpec((Cout, 1), lambda i: (0, 0)),
            pl.BlockSpec((Cout, 9 * Cout), lambda i: (0, 0)),
            pl.BlockSpec((Cout, 1), lambda i: (0, 0)),
        ],
        out_specs=pl.BlockSpec((bt, Cout, H * W), lambda i: (i, 0, 0)),
        compiler_params=pltpu.CompilerParams(
            dimension_semantics=("parallel",)),
    )(x3, w1m, bb1, w2m, bb2)

    Ho, Wo = H // 2, W // 2
    # pooled values sit at (even i, even j); strided slice + it's already NCHW
    out = out.reshape(B, Cout, Ho, 2, Wo, 2)[:, :, :, 0, :, 0]
    return out


def ref_unet_down(x_nchw, params, eps=1e-5):
    (w1, b1, g1, be1, rm1, rv1,
     w2, b2, g2, be2, rm2, rv2) = params
    x = x_nchw.astype(jnp.float32)

    def conv_bn_gelu(x, w, b, g, be, rm, rv):
        y = lax.conv_general_dilated(
            x, w, (1, 1), ((1, 1), (1, 1)),
            dimension_numbers=("NCHW", "OIHW", "NCHW"))
        y = y + b[None, :, None, None]
        y = (y - rm[None, :, None, None]) / jnp.sqrt(rv[None, :, None, None] + eps)
        y = y * g[None, :, None, None] + be[None, :, None, None]
        return jax.nn.gelu(y, approximate=False)

    x1 = conv_bn_gelu(x, w1, b1, g1, be1, rm1, rv1)
    x2 = conv_bn_gelu(x1, w2, b2, g2, be2, rm2, rv2)
    B, C, H, W = x2.shape
    return x2.reshape(B, C, H // 2, 2, W // 2, 2).max(axis=(3, 5))


if __name__ == "__main__":
    B, Cin, Cout, H, W = 2, 4, 8, 16, 16
    keys = jax.random.split(jax.random.PRNGKey(0), 13)

    x = jax.random.normal(keys[0], (B, Cin, H, W), jnp.float32)       # NCHW

    w1 = jax.random.normal(keys[1], (Cout, Cin, 3, 3), jnp.float32) / math.sqrt(Cin * 9)
    b1 = 0.05 * jax.random.normal(keys[2], (Cout,), jnp.float32)
    w2 = jax.random.normal(keys[3], (Cout, Cout, 3, 3), jnp.float32) / math.sqrt(Cout * 9)
    b2 = 0.05 * jax.random.normal(keys[4], (Cout,), jnp.float32)

    g1 = 1.0 + 0.1 * jax.random.normal(keys[5], (Cout,), jnp.float32)
    be1 = 0.05 * jax.random.normal(keys[6], (Cout,), jnp.float32)
    rm1 = 0.05 * jax.random.normal(keys[7], (Cout,), jnp.float32)
    rv1 = jax.random.uniform(keys[8], (Cout,), jnp.float32, 0.5, 1.5)

    g2 = 1.0 + 0.1 * jax.random.normal(keys[9], (Cout,), jnp.float32)
    be2 = 0.05 * jax.random.normal(keys[10], (Cout,), jnp.float32)
    rm2 = 0.05 * jax.random.normal(keys[11], (Cout,), jnp.float32)
    rv2 = jax.random.uniform(keys[12], (Cout,), jnp.float32, 0.5, 1.5)

    params = (w1, b1, g1, be1, rm1, rv1, w2, b2, g2, be2, rm2, rv2)

    out = jax.block_until_ready(unet_down(x, params))
    ref = jax.block_until_ready(ref_unet_down(x, params))

    assert out.shape == (B, Cout, H // 2, W // 2), out.shape
    max_err = float(jnp.max(jnp.abs(out - ref)))
    assert max_err < 1e-3, f"max abs error {max_err}"

    print("KERNEL_OK")
</pallas_src>

<mosaic_0001>
module attributes {stable_mosaic.version = 11 : i64} {
  func.func @unet_down_kernel(%arg0: i32, %arg1: memref<1x4x256xf32, #tpu.memory_space<vmem>>, %arg2: memref<8x36xf32, #tpu.memory_space<vmem>>, %arg3: memref<8x1xf32, #tpu.memory_space<vmem>>, %arg4: memref<8x72xf32, #tpu.memory_space<vmem>>, %arg5: memref<8x1xf32, #tpu.memory_space<vmem>>, %arg6: memref<1x8x256xf32, #tpu.memory_space<vmem>>) attributes {dimension_semantics = [#tpu.dimension_semantics<parallel>], iteration_bounds = array<i64: 2>, scalar_prefetch = 0 : i64, scratch_operands = 0 : i64, tpu.core_type = #tpu.core_type<tc>, window_params = [{transform_indices = @transform_0, window_bounds = array<i64: 1, 4, 256>}, {pipeline_mode = #tpu.pipeline_mode<synchronous>, transform_indices = @transform_1, window_bounds = array<i64: 8, 36>}, {pipeline_mode = #tpu.pipeline_mode<synchronous>, transform_indices = @transform_2, window_bounds = array<i64: 8, 1>}, {pipeline_mode = #tpu.pipeline_mode<synchronous>, transform_indices = @transform_3, window_bounds = array<i64: 8, 72>}, {pipeline_mode = #tpu.pipeline_mode<synchronous>, transform_indices = @transform_4, window_bounds = array<i64: 8, 1>}, {transform_indices = @transform_5, window_bounds = array<i64: 1, 8, 256>}]} {
    %0 = tpu.iota {dimensions = array<i32: 1>} : vector<1x256xi32>
    %c16_i32 = arith.constant 16 : i32
    %c0_i32 = arith.constant 0 : i32
    %1 = arith.cmpi eq, %c16_i32, %c0_i32 : i32
    %c1_i32 = arith.constant 1 : i32
    %2 = arith.select %1, %c1_i32, %c16_i32 : i32
    %3 = vector.broadcast %2 : i32 to vector<1x256xi32>
    %4 = arith.remsi %0, %3 : vector<1x256xi32>
    %c0_i32_0 = arith.constant 0 : i32
    %5 = vector.broadcast %c0_i32_0 : i32 to vector<1x256xi32>
    %6 = arith.cmpi ne, %4, %5 : vector<1x256xi32>
    %c0_i32_1 = arith.constant 0 : i32
    %7 = vector.broadcast %c0_i32_1 : i32 to vector<1x256xi32>
    %8 = arith.cmpi slt, %4, %7 : vector<1x256xi32>
    %c0_i32_2 = arith.constant 0 : i32
    %9 = arith.cmpi slt, %2, %c0_i32_2 : i32
    %10 = vector.broadcast %9 : i1 to vector<1x256xi1>
    %11 = vector.broadcast %10 : vector<1x256xi1> to vector<1x256xi1>
    %12 = arith.xori %8, %11 : vector<1x256xi1>
    %13 = arith.andi %12, %6 : vector<1x256xi1>
    %14 = vector.broadcast %2 : i32 to vector<1x256xi32>
    %15 = arith.addi %4, %14 : vector<1x256xi32>
    %16 = arith.select %13, %15, %4 : vector<1x256xi1>, vector<1x256xi32>
    %c1_i32_3 = arith.constant 1 : i32
    %17 = vector.broadcast %c1_i32_3 : i32 to vector<1x256xi32>
    %18 = arith.cmpi sge, %16, %17 : vector<1x256xi32>
    %c14_i32 = arith.constant 14 : i32
    %19 = vector.broadcast %c14_i32 : i32 to vector<1x256xi32>
    %20 = arith.cmpi sle, %16, %19 : vector<1x256xi32>
    %c0 = arith.constant 0 : index
    %c0_4 = arith.constant 0 : index
    %21 = vector.load %arg2[%c0, %c0_4] : memref<8x36xf32, #tpu.memory_space<vmem>>, vector<8x36xf32>
    %c0_5 = arith.constant 0 : index
    %c0_6 = arith.constant 0 : index
    %22 = vector.load %arg3[%c0_5, %c0_6] : memref<8x1xf32, #tpu.memory_space<vmem>>, vector<8x1xf32>
    %c0_7 = arith.constant 0 : index
    %c0_8 = arith.constant 0 : index
    %23 = vector.load %arg4[%c0_7, %c0_8] : memref<8x72xf32, #tpu.memory_space<vmem>>, vector<8x72xf32>
    %c0_9 = arith.constant 0 : index
    %c0_10 = arith.constant 0 : index
    %24 = vector.load %arg5[%c0_9, %c0_10] : memref<8x1xf32, #tpu.memory_space<vmem>>, vector<8x1xf32>
    %cst = arith.constant 0.000000e+00 : f32
    %25 = vector.broadcast %cst : f32 to vector<8x17xf32>
    %c0_11 = arith.constant 0 : index
    %c0_12 = arith.constant 0 : index
    %c0_13 = arith.constant 0 : index
    %26 = vector.load %arg1[%c0_11, %c0_12, %c0_13] : memref<1x4x256xf32, #tpu.memory_space<vmem>>, vector<1x4x256xf32>
    %27 = vector.shape_cast %26 : vector<1x4x256xf32> to vector<4x256xf32>
    %cst_14 = arith.constant 0.000000e+00 : f32
    %28 = vector.broadcast %cst_14 : f32 to vector<4x17xf32>
    %29 = tpu.concatenate %28, %27, %28 in 1 : vector<4x17xf32>, vector<4x256xf32>, vector<4x17xf32> -> vector<4x290xf32>
    %30 = vector.extract_strided_slice %29 {offsets = [0, 0], sizes = [4, 256], strides = [1, 1]} : vector<4x290xf32> to vector<4x256xf32>
    %cst_15 = arith.constant 0.000000e+00 : f32
    %31 = vector.shape_cast %18 : vector<1x256xi1> to vector<1x256xi1>
    %32 = vector.broadcast %31 : vector<1x256xi1> to vector<4x256xi1>
    %33 = vector.broadcast %cst_15 : f32 to vector<4x256xf32>
    %34 = arith.select %32, %30, %33 : vector<4x256xi1>, vector<4x256xf32>
    %35 = vector.extract_strided_slice %29 {offsets = [0, 1], sizes = [4, 256], strides = [1, 1]} : vector<4x290xf32> to vector<4x256xf32>
    %36 = vector.extract_strided_slice %29 {offsets = [0, 2], sizes = [4, 256], strides = [1, 1]} : vector<4x290xf32> to vector<4x256xf32>
    %cst_16 = arith.constant 0.000000e+00 : f32
    %37 = vector.shape_cast %20 : vector<1x256xi1> to vector<1x256xi1>
    %38 = vector.broadcast %37 : vector<1x256xi1> to vector<4x256xi1>
    %39 = vector.broadcast %cst_16 : f32 to vector<4x256xf32>
    %40 = arith.select %38, %36, %39 : vector<4x256xi1>, vector<4x256xf32>
    %41 = vector.extract_strided_slice %29 {offsets = [0, 16], sizes = [4, 256], strides = [1, 1]} : vector<4x290xf32> to vector<4x256xf32>
    %cst_17 = arith.constant 0.000000e+00 : f32
    %42 = vector.shape_cast %18 : vector<1x256xi1> to vector<1x256xi1>
    %43 = vector.broadcast %42 : vector<1x256xi1> to vector<4x256xi1>
    %44 = vector.broadcast %cst_17 : f32 to vector<4x256xf32>
    %45 = arith.select %43, %41, %44 : vector<4x256xi1>, vector<4x256xf32>
    %46 = vector.extract_strided_slice %29 {offsets = [0, 17], sizes = [4, 256], strides = [1, 1]} : vector<4x290xf32> to vector<4x256xf32>
    %47 = vector.extract_strided_slice %29 {offsets = [0, 18], sizes = [4, 256], strides = [1, 1]} : vector<4x290xf32> to vector<4x256xf32>
    %cst_18 = arith.constant 0.000000e+00 : f32
    %48 = vector.shape_cast %20 : vector<1x256xi1> to vector<1x256xi1>
    %49 = vector.broadcast %48 : vector<1x256xi1> to vector<4x256xi1>
    %50 = vector.broadcast %cst_18 : f32 to vector<4x256xf32>
    %51 = arith.select %49, %47, %50 : vector<4x256xi1>, vector<4x256xf32>
    %52 = vector.extract_strided_slice %29 {offsets = [0, 32], sizes = [4, 256], strides = [1, 1]} : vector<4x290xf32> to vector<4x256xf32>
    %cst_19 = arith.constant 0.000000e+00 : f32
    %53 = vector.shape_cast %18 : vector<1x256xi1> to vector<1x256xi1>
    %54 = vector.broadcast %53 : vector<1x256xi1> to vector<4x256xi1>
    %55 = vector.broadcast %cst_19 : f32 to vector<4x256xf32>
    %56 = arith.select %54, %52, %55 : vector<4x256xi1>, vector<4x256xf32>
    %57 = vector.extract_strided_slice %29 {offsets = [0, 33], sizes = [4, 256], strides = [1, 1]} : vector<4x290xf32> to vector<4x256xf32>
    %58 = vector.extract_strided_slice %29 {offsets = [0, 34], sizes = [4, 256], strides = [1, 1]} : vector<4x290xf32> to vector<4x256xf32>
    %cst_20 = arith.constant 0.000000e+00 : f32
    %59 = vector.shape_cast %20 : vector<1x256xi1> to vector<1x256xi1>
    %60 = vector.broadcast %59 : vector<1x256xi1> to vector<4x256xi1>
    %61 = vector.broadcast %cst_20 : f32 to vector<4x256xf32>
    %62 = arith.select %60, %58, %61 : vector<4x256xi1>, vector<4x256xf32>
    %63 = tpu.concatenate %34, %35, %40, %45, %46, %51, %56, %57, %62 in 0 : vector<4x256xf32>, vector<4x256xf32>, vector<4x256xf32>, vector<4x256xf32>, vector<4x256xf32>, vector<4x256xf32>, vector<4x256xf32>, vector<4x256xf32>, vector<4x256xf32> -> vector<36x256xf32>
    %cst_21 = arith.constant dense<0.000000e+00> : vector<8x256xf32>
    %64 = tpu.matmul %21, %63, %cst_21 {dimension_numbers = #tpu.dot_dimension_numbers<[1], [0], [0], [1], [0, 0, 1, 1], [], []>} : vector<8x36xf32>, vector<36x256xf32>, vector<8x256xf32> -> vector<8x256xf32>
    %65 = vector.broadcast %22 : vector<8x1xf32> to vector<8x256xf32>
    %66 = arith.addf %64, %65 : vector<8x256xf32>
    %cst_22 = arith.constant 5.000000e-01 : f32
    %67 = vector.broadcast %cst_22 : f32 to vector<8x256xf32>
    %68 = arith.mulf %67, %66 : vector<8x256xf32>
    %cst_23 = arith.constant 0.707106769 : f32
    %69 = vector.broadcast %cst_23 : f32 to vector<8x256xf32>
    %70 = arith.mulf %66, %69 : vector<8x256xf32>
    %cst_24 = arith.constant 0.000000e+00 : f32
    %71 = vector.broadcast %cst_24 : f32 to vector<8x256xf32>
    %72 = arith.cmpf oge, %70, %71 : vector<8x256xf32>
    %cst_25 = arith.constant 1.000000e+00 : f32
    %cst_26 = arith.constant -1.000000e+00 : f32
    %73 = vector.broadcast %cst_25 : f32 to vector<8x256xf32>
    %74 = vector.broadcast %cst_26 : f32 to vector<8x256xf32>
    %75 = arith.select %72, %73, %74 : vector<8x256xi1>, vector<8x256xf32>
    %76 = math.absf %70 : vector<8x256xf32>
    %cst_27 = arith.constant 0.327591091 : f32
    %77 = vector.broadcast %cst_27 : f32 to vector<8x256xf32>
    %78 = arith.mulf %77, %76 : vector<8x256xf32>
    %cst_28 = arith.constant 1.000000e+00 : f32
    %79 = vector.broadcast %cst_28 : f32 to vector<8x256xf32>
    %80 = arith.addf %79, %78 : vector<8x256xf32>
    %cst_29 = arith.constant 1.000000e+00 : f32
    %81 = vector.broadcast %cst_29 : f32 to vector<8x256xf32>
    %82 = arith.divf %81, %80 : vector<8x256xf32>
    %cst_30 = arith.constant 1.06140542 : f32
    %83 = vector.broadcast %cst_30 : f32 to vector<8x256xf32>
    %84 = arith.mulf %83, %82 : vector<8x256xf32>
    %cst_31 = arith.constant -1.45315206 : f32
    %85 = vector.broadcast %cst_31 : f32 to vector<8x256xf32>
    %86 = arith.addf %84, %85 : vector<8x256xf32>
    %87 = arith.mulf %86, %82 : vector<8x256xf32>
    %cst_32 = arith.constant 1.42141378 : f32
    %88 = vector.broadcast %cst_32 : f32 to vector<8x256xf32>
    %89 = arith.addf %87, %88 : vector<8x256xf32>
    %90 = arith.mulf %89, %82 : vector<8x256xf32>
    %cst_33 = arith.constant -0.284496725 : f32
    %91 = vector.broadcast %cst_33 : f32 to vector<8x256xf32>
    %92 = arith.addf %90, %91 : vector<8x256xf32>
    %93 = arith.mulf %92, %82 : vector<8x256xf32>
    %cst_34 = arith.constant 0.254829586 : f32
    %94 = vector.broadcast %cst_34 : f32 to vector<8x256xf32>
    %95 = arith.addf %93, %94 : vector<8x256xf32>
    %96 = arith.mulf %95, %82 : vector<8x256xf32>
    %cst_35 = arith.constant 0.000000e+00 : f32
    %97 = vector.broadcast %cst_35 : f32 to vector<8x256xf32>
    %98 = arith.subf %97, %76 : vector<8x256xf32>
    %99 = arith.mulf %98, %76 : vector<8x256xf32>
    %100 = math.exp %99 : vector<8x256xf32>
    %101 = arith.mulf %96, %100 : vector<8x256xf32>
    %cst_36 = arith.constant 1.000000e+00 : f32
    %102 = vector.broadcast %cst_36 : f32 to vector<8x256xf32>
    %103 = arith.subf %102, %101 : vector<8x256xf32>
    %104 = arith.mulf %75, %103 : vector<8x256xf32>
    %cst_37 = arith.constant 1.000000e+00 : f32
    %105 = vector.broadcast %cst_37 : f32 to vector<8x256xf32>
    %106 = arith.addf %105, %104 : vector<8x256xf32>
    %107 = arith.mulf %68, %106 : vector<8x256xf32>
    %cst_38 = arith.constant 0.000000e+00 : f32
    %108 = vector.broadcast %cst_38 : f32 to vector<8x17xf32>
    %109 = tpu.concatenate %108, %107, %108 in 1 : vector<8x17xf32>, vector<8x256xf32>, vector<8x17xf32> -> vector<8x290xf32>
    %110 = vector.extract_strided_slice %109 {offsets = [0, 0], sizes = [8, 256], strides = [1, 1]} : vector<8x290xf32> to vector<8x256xf32>
    %cst_39 = arith.constant 0.000000e+00 : f32
    %111 = vector.shape_cast %18 : vector<1x256xi1> to vector<1x256xi1>
    %112 = vector.broadcast %111 : vector<1x256xi1> to vector<8x256xi1>
    %113 = vector.broadcast %cst_39 : f32 to vector<8x256xf32>
    %114 = arith.select %112, %110, %113 : vector<8x256xi1>, vector<8x256xf32>
    %115 = vector.extract_strided_slice %109 {offsets = [0, 1], sizes = [8, 256], strides = [1, 1]} : vector<8x290xf32> to vector<8x256xf32>
    %116 = vector.extract_strided_slice %109 {offsets = [0, 2], sizes = [8, 256], strides = [1, 1]} : vector<8x290xf32> to vector<8x256xf32>
    %cst_40 = arith.constant 0.000000e+00 : f32
    %117 = vector.shape_cast %20 : vector<1x256xi1> to vector<1x256xi1>
    %118 = vector.broadcast %117 : vector<1x256xi1> to vector<8x256xi1>
    %119 = vector.broadcast %cst_40 : f32 to vector<8x256xf32>
    %120 = arith.select %118, %116, %119 : vector<8x256xi1>, vector<8x256xf32>
    %121 = vector.extract_strided_slice %109 {offsets = [0, 16], sizes = [8, 256], strides = [1, 1]} : vector<8x290xf32> to vector<8x256xf32>
    %cst_41 = arith.constant 0.000000e+00 : f32
    %122 = vector.shape_cast %18 : vector<1x256xi1> to vector<1x256xi1>
    %123 = vector.broadcast %122 : vector<1x256xi1> to vector<8x256xi1>
    %124 = vector.broadcast %cst_41 : f32 to vector<8x256xf32>
    %125 = arith.select %123, %121, %124 : vector<8x256xi1>, vector<8x256xf32>
    %126 = vector.extract_strided_slice %109 {offsets = [0, 17], sizes = [8, 256], strides = [1, 1]} : vector<8x290xf32> to vector<8x256xf32>
    %127 = vector.extract_strided_slice %109 {offsets = [0, 18], sizes = [8, 256], strides = [1, 1]} : vector<8x290xf32> to vector<8x256xf32>
    %cst_42 = arith.constant 0.000000e+00 : f32
    %128 = vector.shape_cast %20 : vector<1x256xi1> to vector<1x256xi1>
    %129 = vector.broadcast %128 : vector<1x256xi1> to vector<8x256xi1>
    %130 = vector.broadcast %cst_42 : f32 to vector<8x256xf32>
    %131 = arith.select %129, %127, %130 : vector<8x256xi1>, vector<8x256xf32>
    %132 = vector.extract_strided_slice %109 {offsets = [0, 32], sizes = [8, 256], strides = [1, 1]} : vector<8x290xf32> to vector<8x256xf32>
    %cst_43 = arith.constant 0.000000e+00 : f32
    %133 = vector.shape_cast %18 : vector<1x256xi1> to vector<1x256xi1>
    %134 = vector.broadcast %133 : vector<1x256xi1> to vector<8x256xi1>
    %135 = vector.broadcast %cst_43 : f32 to vector<8x256xf32>
    %136 = arith.select %134, %132, %135 : vector<8x256xi1>, vector<8x256xf32>
    %137 = vector.extract_strided_slice %109 {offsets = [0, 33], sizes = [8, 256], strides = [1, 1]} : vector<8x290xf32> to vector<8x256xf32>
    %138 = vector.extract_strided_slice %109 {offsets = [0, 34], sizes = [8, 256], strides = [1, 1]} : vector<8x290xf32> to vector<8x256xf32>
    %cst_44 = arith.constant 0.000000e+00 : f32
    %139 = vector.shape_cast %20 : vector<1x256xi1> to vector<1x256xi1>
    %140 = vector.broadcast %139 : vector<1x256xi1> to vector<8x256xi1>
    %141 = vector.broadcast %cst_44 : f32 to vector<8x256xf32>
    %142 = arith.select %140, %138, %141 : vector<8x256xi1>, vector<8x256xf32>
    %143 = tpu.concatenate %114, %115, %120, %125, %126, %131, %136, %137, %142 in 0 : vector<8x256xf32>, vector<8x256xf32>, vector<8x256xf32>, vector<8x256xf32>, vector<8x256xf32>, vector<8x256xf32>, vector<8x256xf32>, vector<8x256xf32>, vector<8x256xf32> -> vector<72x256xf32>
    %cst_45 = arith.constant dense<0.000000e+00> : vector<8x256xf32>
    %144 = tpu.matmul %23, %143, %cst_45 {dimension_numbers = #tpu.dot_dimension_numbers<[1], [0], [0], [1], [0, 0, 1, 1], [], []>} : vector<8x72xf32>, vector<72x256xf32>, vector<8x256xf32> -> vector<8x256xf32>
    %145 = vector.broadcast %24 : vector<8x1xf32> to vector<8x256xf32>
    %146 = arith.addf %144, %145 : vector<8x256xf32>
    %cst_46 = arith.constant 5.000000e-01 : f32
    %147 = vector.broadcast %cst_46 : f32 to vector<8x256xf32>
    %148 = arith.mulf %147, %146 : vector<8x256xf32>
    %cst_47 = arith.constant 0.707106769 : f32
    %149 = vector.broadcast %cst_47 : f32 to vector<8x256xf32>
    %150 = arith.mulf %146, %149 : vector<8x256xf32>
    %cst_48 = arith.constant 0.000000e+00 : f32
    %151 = vector.broadcast %cst_48 : f32 to vector<8x256xf32>
    %152 = arith.cmpf oge, %150, %151 : vector<8x256xf32>
    %cst_49 = arith.constant 1.000000e+00 : f32
    %cst_50 = arith.constant -1.000000e+00 : f32
    %153 = vector.broadcast %cst_49 : f32 to vector<8x256xf32>
    %154 = vector.broadcast %cst_50 : f32 to vector<8x256xf32>
    %155 = arith.select %152, %153, %154 : vector<8x256xi1>, vector<8x256xf32>
    %156 = math.absf %150 : vector<8x256xf32>
    %cst_51 = arith.constant 0.327591091 : f32
    %157 = vector.broadcast %cst_51 : f32 to vector<8x256xf32>
    %158 = arith.mulf %157, %156 : vector<8x256xf32>
    %cst_52 = arith.constant 1.000000e+00 : f32
    %159 = vector.broadcast %cst_52 : f32 to vector<8x256xf32>
    %160 = arith.addf %159, %158 : vector<8x256xf32>
    %cst_53 = arith.constant 1.000000e+00 : f32
    %161 = vector.broadcast %cst_53 : f32 to vector<8x256xf32>
    %162 = arith.divf %161, %160 : vector<8x256xf32>
    %cst_54 = arith.constant 1.06140542 : f32
    %163 = vector.broadcast %cst_54 : f32 to vector<8x256xf32>
    %164 = arith.mulf %163, %162 : vector<8x256xf32>
    %cst_55 = arith.constant -1.45315206 : f32
    %165 = vector.broadcast %cst_55 : f32 to vector<8x256xf32>
    %166 = arith.addf %164, %165 : vector<8x256xf32>
    %167 = arith.mulf %166, %162 : vector<8x256xf32>
    %cst_56 = arith.constant 1.42141378 : f32
    %168 = vector.broadcast %cst_56 : f32 to vector<8x256xf32>
    %169 = arith.addf %167, %168 : vector<8x256xf32>
    %170 = arith.mulf %169, %162 : vector<8x256xf32>
    %cst_57 = arith.constant -0.284496725 : f32
    %171 = vector.broadcast %cst_57 : f32 to vector<8x256xf32>
    %172 = arith.addf %170, %171 : vector<8x256xf32>
    %173 = arith.mulf %172, %162 : vector<8x256xf32>
    %cst_58 = arith.constant 0.254829586 : f32
    %174 = vector.broadcast %cst_58 : f32 to vector<8x256xf32>
    %175 = arith.addf %173, %174 : vector<8x256xf32>
    %176 = arith.mulf %175, %162 : vector<8x256xf32>
    %cst_59 = arith.constant 0.000000e+00 : f32
    %177 = vector.broadcast %cst_59 : f32 to vector<8x256xf32>
    %178 = arith.subf %177, %156 : vector<8x256xf32>
    %179 = arith.mulf %178, %156 : vector<8x256xf32>
    %180 = math.exp %179 : vector<8x256xf32>
    %181 = arith.mulf %176, %180 : vector<8x256xf32>
    %cst_60 = arith.constant 1.000000e+00 : f32
    %182 = vector.broadcast %cst_60 : f32 to vector<8x256xf32>
    %183 = arith.subf %182, %181 : vector<8x256xf32>
    %184 = arith.mulf %155, %183 : vector<8x256xf32>
    %cst_61 = arith.constant 1.000000e+00 : f32
    %185 = vector.broadcast %cst_61 : f32 to vector<8x256xf32>
    %186 = arith.addf %185, %184 : vector<8x256xf32>
    %187 = arith.mulf %148, %186 : vector<8x256xf32>
    %188 = tpu.concatenate %187, %25 in 1 : vector<8x256xf32>, vector<8x17xf32> -> vector<8x273xf32>
    %189 = vector.extract_strided_slice %188 {offsets = [0, 1], sizes = [8, 256], strides = [1, 1]} : vector<8x273xf32> to vector<8x256xf32>
    %190 = arith.maximumf %187, %189 : vector<8x256xf32>
    %191 = vector.extract_strided_slice %188 {offsets = [0, 16], sizes = [8, 256], strides = [1, 1]} : vector<8x273xf32> to vector<8x256xf32>
    %192 = vector.extract_strided_slice %188 {offsets = [0, 17], sizes = [8, 256], strides = [1, 1]} : vector<8x273xf32> to vector<8x256xf32>
    %193 = arith.maximumf %191, %192 : vector<8x256xf32>
    %194 = arith.maximumf %190, %193 : vector<8x256xf32>
    %c0_62 = arith.constant 0 : index
    %c0_63 = arith.constant 0 : index
    %c0_64 = arith.constant 0 : index
    %195 = vector.load %arg6[%c0_62, %c0_63, %c0_64] : memref<1x8x256xf32, #tpu.memory_space<vmem>>, vector<1x8x256xf32>
    %196 = vector.shape_cast %195 : vector<1x8x256xf32> to vector<8x256xf32>
    %197 = vector.shape_cast %194 : vector<8x256xf32> to vector<1x8x256xf32>
    tpu.vector_store %arg6[%c0_62, %c0_63, %c0_64], %197 {strides = array<i32>} : memref<1x8x256xf32, #tpu.memory_space<vmem>>, vector<1x8x256xf32>,
    return
  }
  func.func @transform_0(%arg0: i32) -> (i32, i32, i32) {
    %c0_i32 = arith.constant 0 : i32
    %c0_i32_0 = arith.constant 0 : i32
    %c0_i32_1 = arith.constant 0 : i32
    return %arg0, %c0_i32, %c0_i32_0 : i32, i32, i32
  }
  func.func @transform_1(%arg0: i32) -> (i32, i32) {
    %c0_i32 = arith.constant 0 : i32
    %c0_i32_0 = arith.constant 0 : i32
    %c0_i32_1 = arith.constant 0 : i32
    return %c0_i32, %c0_i32_0 : i32, i32
  }
  func.func @transform_2(%arg0: i32) -> (i32, i32) {
    %c0_i32 = arith.constant 0 : i32
    %c0_i32_0 = arith.constant 0 : i32
    %c0_i32_1 = arith.constant 0 : i32
    return %c0_i32, %c0_i32_0 : i32, i32
  }
  func.func @transform_3(%arg0: i32) -> (i32, i32) {
    %c0_i32 = arith.constant 0 : i32
    %c0_i32_0 = arith.constant 0 : i32
    %c0_i32_1 = arith.constant 0 : i32
    return %c0_i32, %c0_i32_0 : i32, i32
  }
  func.func @transform_4(%arg0: i32) -> (i32, i32) {
    %c0_i32 = arith.constant 0 : i32
    %c0_i32_0 = arith.constant 0 : i32
    %c0_i32_1 = arith.constant 0 : i32
    return %c0_i32, %c0_i32_0 : i32, i32
  }
  func.func @transform_5(%arg0: i32) -> (i32, i32, i32) {
    %c0_i32 = arith.constant 0 : i32
    %c0_i32_0 = arith.constant 0 : i32
    %c0_i32_1 = arith.constant 0 : i32
    return %arg0, %c0_i32, %c0_i32_0 : i32, i32, i32
  }
}

</mosaic_0001>

<llo_original>
// kernel: tpu_custom_call.1
$region0: #{tpu_custom_call.1}
  #allocation0 [shape = 'u32[]', space=smem, size = 0x4, offset = 0x4, fixed_abs, tag = 'smem constant byte address 0x4 - core index']
  #allocation1 [shape = 'u32[144,128]{1,0:T(1,128)}', space=vmem, size = 0x12000, scoped, tag = 'internal scratch']
  %s0 = inlined_call_operand.vmem [shape: f32[2,4,256], index: 0, kind: input, shape index: {}]
  %s1 = inlined_call_operand.hbm [shape: f32[8,36], index: 1, kind: input, shape index: {}]
  %s2 = inlined_call_operand.vmem [shape: f32[8,1], index: 2, kind: input, shape index: {}]
  %s3 = inlined_call_operand.vmem [shape: f32[8,72], index: 3, kind: input, shape index: {}]
  %s4 = inlined_call_operand.vmem [shape: f32[8,1], index: 4, kind: input, shape index: {}]
  %s5 = inlined_call_operand.hbm [shape: f32[2,8,256], index: 5, kind: output, shape index: {}]
  %s6 = sld [smem:[#allocation0]]
  $region57: #{tpu_custom_call.1} parent=0
    _
  %s8 = ssub.s32 1, %s6
  %s9 = scalar_select 0, %s8, %s6
  $region1: #{tpu_custom_call.1} parent=0
    #allocation2 [shape = 'u8[4096]{0}', space=vmem, size = 0x1000, scoped, tag = 'input window, operand 1, single buffered']
    #allocation3 [shape = 's32[2]{0}', space=sflag, size = 0x8, scoped, tag = 'scoped memory for tpu_custom_call.1']
    #allocation4 [shape = 's32[2]{0}', space=sflag, size = 0x8, scoped, tag = 'scoped memory for tpu_custom_call.1']
    #allocation5 [shape = 'u8[16384]{0}', space=vmem, size = 0x4000, scoped, tag = 'output window, operand 0']
    %10 = vsyncpa [#allocation3], 0
    %11 = vsyncpa [#allocation4], 0
    %s12 = scalar_lea.sflag [#allocation4], 1
    %13 = vsyncpa %s12, 0
    loop: start=0, step=1, limit=4
    $region2: #{tpu_custom_call.1} parent=1 // loop_pre_header
      _
    $region3: #{tpu_custom_call.1} parent=1 // loop_header
      %s15 = sphi 0, %s19
      %p16 = scmp.ge.s32.totalorder %s15, 4
      %s25 = sphi 0, %s27
      %s28 = sphi 0, %s25
      %s29 = sphi 0, %s28
      %s45 = sphi 0, %s29
      %s49 = sphi 0, %s49
      %s51 = sphi 0, %s49
      %s52 = sphi 0, %s51
      %s66 = sphi 0, %s52
      %s70 = sphi 0, %s70
      %s72 = sphi 0, %s70
      %s73 = sphi 0, %s72
      %s87 = sphi 0, %s73
      %s91 = sphi 0, %s91
      %s93 = sphi 0, %s91
      %s94 = sphi 0, %s93
      %s108 = sphi 0, %s94
      %s112 = sphi 0, %s112
      %s114 = sphi 0, %s112
      %s115 = sphi 0, %s114
      %s129 = sphi 0, %s115
      %s135 = sphi 0, %s137
      %s138 = sphi 0, %s135
      %s139 = sphi 0, %s138
      %s155 = sphi 0, %s139
    $region4: #{tpu_custom_call.1} parent=1 // loop_header_branch
      %18 = sbr.rel (%p16) target = $region8
    $region5: #{tpu_custom_call.1} parent=1 // loop_body
      %s20 = ssub.s32 %s15, 1
      %s21 = ssub.s32 %s15, 2
      %s22 = sadd.s32 %s15, 1
      %s23 = ssub.s32 %s15, %s22
      %p24 = scmp.eq.s32.totalorder %s23, 0
      %s26 = sadd.s32 %s25, 1
      %s27 = scalar_select %p24, %s25, %s26
      %p30 = pneg %p24
      %p31 = scmp.eq.s32.totalorder %s15, 1
      %p32 = por %p30, %p31
      %p33 = scmp.ne.s32.totalorder %s25, %s28
      %p34 = scmp.eq.s32.totalorder %s15, 0
      %p35 = por %p33, %p34
      %p36 = scmp.ne.s32.totalorder %s25, %s28
      %p37 = scmp.eq.s32.totalorder %s20, 1
      %p38 = por %p36, %p37
      %p39 = scmp.ne.s32.totalorder %s28, %s29
      %p40 = scmp.eq.s32.totalorder %s20, 0
      %p41 = por %p39, %p40
      %p42 = scmp.ne.s32.totalorder %s28, %s29
      %p43 = scmp.eq.s32.totalorder %s21, 1
      %p44 = por %p42, %p43
      %p46 = scmp.ne.s32.totalorder %s29, %s45
      %p47 = scmp.eq.s32.totalorder %s21, 0
      %p48 = por %p46, %p47
      %s50 = sadd.s32 %s49, 1
      %p53 = scmp.eq.s32.totalorder %s15, 1
      %p54 = scmp.ne.s32.totalorder %s49, %s51
      %p55 = scmp.eq.s32.totalorder %s15, 0
      %p56 = por %p54, %p55
      %p57 = scmp.ne.s32.totalorder %s49, %s51
      %p58 = scmp.eq.s32.totalorder %s20, 1
      %p59 = por %p57, %p58
      %p60 = scmp.ne.s32.totalorder %s51, %s52
      %p61 = scmp.eq.s32.totalorder %s20, 0
      %p62 = por %p60, %p61
      %p63 = scmp.ne.s32.totalorder %s51, %s52
      %p64 = scmp.eq.s32.totalorder %s21, 1
      %p65 = por %p63, %p64
      %p67 = scmp.ne.s32.totalorder %s52, %s66
      %p68 = scmp.eq.s32.totalorder %s21, 0
      %p69 = por %p67, %p68
      %s71 = sadd.s32 %s70, 1
      %p74 = scmp.eq.s32.totalorder %s15, 1
      %p75 = scmp.ne.s32.totalorder %s70, %s72
      %p76 = scmp.eq.s32.totalorder %s15, 0
      %p77 = por %p75, %p76
      %p78 = scmp.ne.s32.totalorder %s70, %s72
      %p79 = scmp.eq.s32.totalorder %s20, 1
      %p80 = por %p78, %p79
      %p81 = scmp.ne.s32.totalorder %s72, %s73
      %p82 = scmp.eq.s32.totalorder %s20, 0
      %p83 = por %p81, %p82
      %p84 = scmp.ne.s32.totalorder %s72, %s73
      %p85 = scmp.eq.s32.totalorder %s21, 1
      %p86 = por %p84, %p85
      %p88 = scmp.ne.s32.totalorder %s73, %s87
      %p89 = scmp.eq.s32.totalorder %s21, 0
      %p90 = por %p88, %p89
      %s92 = sadd.s32 %s91, 1
      %p95 = scmp.eq.s32.totalorder %s15, 1
      %p96 = scmp.ne.s32.totalorder %s91, %s93
      %p97 = scmp.eq.s32.totalorder %s15, 0
      %p98 = por %p96, %p97
      %p99 = scmp.ne.s32.totalorder %s91, %s93
      %p100 = scmp.eq.s32.totalorder %s20, 1
      %p101 = por %p99, %p100
      %p102 = scmp.ne.s32.totalorder %s93, %s94
      %p103 = scmp.eq.s32.totalorder %s20, 0
      %p104 = por %p102, %p103
      %p105 = scmp.ne.s32.totalorder %s93, %s94
      %p106 = scmp.eq.s32.totalorder %s21, 1
      %p107 = por %p105, %p106
      %p109 = scmp.ne.s32.totalorder %s94, %s108
      %p110 = scmp.eq.s32.totalorder %s21, 0
      %p111 = por %p109, %p110
      %s113 = sadd.s32 %s112, 1
      %p116 = scmp.eq.s32.totalorder %s15, 1
      %p117 = scmp.ne.s32.totalorder %s112, %s114
      %p118 = scmp.eq.s32.totalorder %s15, 0
      %p119 = por %p117, %p118
      %p120 = scmp.ne.s32.totalorder %s112, %s114
      %p121 = scmp.eq.s32.totalorder %s20, 1
      %p122 = por %p120, %p121
      %p123 = scmp.ne.s32.totalorder %s114, %s115
      %p124 = scmp.eq.s32.totalorder %s20, 0
      %p125 = por %p123, %p124
      %p126 = scmp.ne.s32.totalorder %s114, %s115
      %p127 = scmp.eq.s32.totalorder %s21, 1
      %p128 = por %p126, %p127
      %p130 = scmp.ne.s32.totalorder %s115, %s129
      %p131 = scmp.eq.s32.totalorder %s21, 0
      %p132 = por %p130, %p131
      %s133 = ssub.s32 %s15, %s22
      %p134 = scmp.eq.s32.totalorder %s133, 0
      %s136 = sadd.s32 %s135, 1
      %s137 = scalar_select %p134, %s135, %s136
      %p140 = pneg %p134
      %p141 = scmp.eq.s32.totalorder %s15, 1
      %p142 = por %p140, %p141
      %p143 = scmp.ne.s32.totalorder %s135, %s138
      %p144 = scmp.eq.s32.totalorder %s15, 0
      %p145 = por %p143, %p144
      %p146 = scmp.ne.s32.totalorder %s135, %s138
      %p147 = scmp.eq.s32.totalorder %s20, 1
      %p148 = por %p146, %p147
      %p149 = scmp.ne.s32.totalorder %s138, %s139
      %p150 = scmp.eq.s32.totalorder %s20, 0
      %p151 = por %p149, %p150
      %p152 = scmp.ne.s32.totalorder %s138, %s139
      %p153 = scmp.eq.s32.totalorder %s21, 1
      %p154 = por %p152, %p153
      %p156 = scmp.ne.s32.totalorder %s139, %s155
      %p157 = scmp.eq.s32.totalorder %s21, 0
      %p158 = por %p156, %p157
      %p159 = scmp.le.s32.totalorder 1, %s15
      %p160 = scmp.lt.s32.totalorder %s15, 3
      %p161 = pnand %p159, %p160
      %p162 = pneg %p161
      // Predicated region
      $region9: #{tpu_custom_call.1} parent=5 // pred_check
        _
      $region10: #{tpu_custom_call.1} parent=5 // pred_check_branch
        %164 = sbr.rel (%p161) target = $region12
      $region11: #{tpu_custom_call.1} parent=5 // pred_region
        %s165 = ssub.s32 %s15, 1
        // Predicated region
        $region13: #{tpu_custom_call.1} parent=11 // pred_check
          %p166 = pneg %p62
        $region14: #{tpu_custom_call.1} parent=11 // pred_check_branch
          %168 = sbr.rel (%p166) target = $region16
        $region15: #{tpu_custom_call.1} parent=11 // pred_region
          %s170 = ssub.s32 128, 128
          %171 = vsyncadd [#allocation3], %s170
          %s173 = sshll.u32 [#allocation2], 4
          %s174 = int_to_ptr.vmem [resolvable:$true] %s173
          %176 = dma.hbm_to_vmem [thread:$0]  %s1, 128, %s174, [#allocation3]
        $region16: #{tpu_custom_call.1} parent=11 // pred_fallthru
          _
        // Predicated region
        $region17: #{tpu_custom_call.1} parent=11 // pred_check
          %p177 = pneg %p83
        $region18: #{tpu_custom_call.1} parent=11 // pred_check_branch
          %179 = sbr.rel (%p177) target = $region20
        $region19: #{tpu_custom_call.1} parent=11 // pred_region
          _
        $region20: #{tpu_custom_call.1} parent=11 // pred_fallthru
          _
        // Predicated region
        $region21: #{tpu_custom_call.1} parent=11 // pred_check
          %p180 = pneg %p104
        $region22: #{tpu_custom_call.1} parent=11 // pred_check_branch
          %182 = sbr.rel (%p180) target = $region24
        $region23: #{tpu_custom_call.1} parent=11 // pred_region
          _
        $region24: #{tpu_custom_call.1} parent=11 // pred_fallthru
          _
        // Predicated region
        $region25: #{tpu_custom_call.1} parent=11 // pred_check
          %p183 = pneg %p125
        $region26: #{tpu_custom_call.1} parent=11 // pred_check_branch
          %185 = sbr.rel (%p183) target = $region28
        $region27: #{tpu_custom_call.1} parent=11 // pred_region
          _
        $region28: #{tpu_custom_call.1} parent=11 // pred_fallthru
          _
      $region12: #{tpu_custom_call.1} parent=5 // pred_fallthru
        _
      %p186 = scmp.lt.s32.totalorder %s15, 2
      // Predicated region
      $region29: #{tpu_custom_call.1} parent=5 // pred_check
        %p187 = pneg %p186
      $region30: #{tpu_custom_call.1} parent=5 // pred_check_branch
        %189 = sbr.rel (%p187) target = $region32
      $region31: #{tpu_custom_call.1} parent=5 // pred_region
        // Predicated region
        $region33: #{tpu_custom_call.1} parent=31 // pred_check
          %p190 = pneg %p35
        $region34: #{tpu_custom_call.1} parent=31 // pred_check_branch
          %192 = sbr.rel (%p190) target = $region36
        $region35: #{tpu_custom_call.1} parent=31 // pred_region
          %p193 = scmp.lt.s32.totalorder %s15, 1
          %s194 = scalar_select %p193, %s15, 1
          %s195 = smul.addr %s194, 2
          %s196 = smul.addr %s195, 4
          %s197 = scalar_lea.vmem %s0, %s196
        $region36: #{tpu_custom_call.1} parent=31 // pred_fallthru
          _
      $region32: #{tpu_custom_call.1} parent=5 // pred_fallthru
        _
      %p198 = scmp.le.s32.totalorder 1, %s15
      %p199 = scmp.lt.s32.totalorder %s15, 3
      %p200 = pnand %p198, %p199
      %p201 = pneg %p200
      // Predicated region
      $region37: #{tpu_custom_call.1} parent=5 // pred_check
        _
      $region38: #{tpu_custom_call.1} parent=5 // pred_check_branch
        %203 = sbr.rel (%p200) target = $region40
      $region39: #{tpu_custom_call.1} parent=5 // pred_region
        %s204 = ssub.s32 %s15, 1
        // Predicated region
        $region41: #{tpu_custom_call.1} parent=39 // pred_check
          %p205 = pneg %p62
        $region42: #{tpu_custom_call.1} parent=39 // pred_check_branch
          %207 = sbr.rel (%p205) target = $region44
        $region43: #{tpu_custom_call.1} parent=39 // pred_region
          %208 = dma.done [#allocation3], 128
        $region44: #{tpu_custom_call.1} parent=39 // pred_fallthru
          _
        %p209 = scmp.lt.s32.totalorder %s20, 1
        %s210 = scalar_select %p209, %s20, 1
        %s211 = smul.addr %s210, 2
        %s212 = smul.addr %s211, 4
        %s213 = scalar_lea.vmem %s0, %s212
        %p214 = pneg %p41
        %p215 = pneg %p38
        %p216 = pneg %p62
        %p217 = pneg %p59
        %p218 = pneg %p83
        %p219 = pneg %p80
        %p220 = pneg %p104
        %p221 = pneg %p101
        %p222 = pneg %p125
        %p223 = pneg %p122
        %p224 = pneg %p151
        %p225 = pneg %p148
        %s226 = sand.u32 %s138, 1
        %s227 = scalar_lea.sflag [#allocation4], %s226
        %s228 = sand.u32 %s138, 1
        %s229 = smul.addr %s228, 16
        %s230 = scalar_lea.vmem [#allocation5], %s229
        %p231 = scmp.lt.s32.totalorder %s20, 1
        %s232 = scalar_select %p231, %s20, 1
        %s233 = smul.addr %s232, 2
        %s234 = smul.addr %s233, 4
        %s235 = scalar_lea.vmem %s0, %s234
        %v236 = vlaneseq
        %v237 = vand.u32 %v236, 127
        %v238 = vadd.s32 %v237, 128
        %vm239 = vcmp.lt.s32.totalorder %v237, 0
        %v240 = vsub.s32 0, %v237
        %v241 = vsel %vm239, %v240, %v237
        %v242 = vshrl.u32 %v241, 4
        %v243 = vand.u32 %v241, 15
        %v244 = vsub.s32 0, %v243
        %v245 = vsel %vm239, %v244, %v243
        %vm246 = vcmp.lt.s32.totalorder %v238, 0
        %v247 = vsub.s32 0, %v238
        %v248 = vsel %vm246, %v247, %v238
        %v249 = vshrl.u32 %v248, 4
        %v250 = vand.u32 %v248, 15
        %v251 = vsub.s32 0, %v250
        %v252 = vsel %vm246, %v251, %v250
        %vm253 = vcmp.ne.s32.totalorder %v245, 0
        %vm254 = vcmp.ne.s32.totalorder %v252, 0
        %vm255 = vcmp.lt.s32.totalorder %v245, 0
        %vm256 = vcmp.lt.s32.totalorder %v252, 0
        %vm257 = vmand %vm255, %vm253
        %vm258 = vmand %vm256, %vm254
        %v259 = vadd.s32 %v245, 16
        %v260 = vadd.s32 %v252, 16
        %v261 = vsel %vm257, %v259, %v245
        %v262 = vsel %vm258, %v260, %v252
        %vm263 = vcmp.ge.s32.totalorder %v261, 1
        %vm264 = vcmp.ge.s32.totalorder %v262, 1
        %vm265 = vcmp.le.s32.totalorder %v261, 14
        %vm266 = vcmp.le.s32.totalorder %v262, 14
        %v267 = vld [vmem:[#allocation2] sm:$0xff]
        %v268 = vld [vmem:[%s2] sm:$0xff]
        %v269 = vld [vmem:[%s3] sm:$0xff]
        %v270 = vld [vmem:[%s4] sm:$0xff]
        %v271 = vld [vmem:[%s235] sm:$0xff]
        %v273 = vcombine.high %v271, %v271
        %274 = vrot.lane.b32.xlu0 %v271, 17
        %v275 = vpop.permute.xlu0 %274
        %276 = vrot.lane.b32.xlu0 %v273, 17
        %v277 = vpop.permute.xlu0 %276
        %vm278 = vcmask 138240
        %v279 = vsel %vm278, %v275, %v277
        %v283 = vsel %vm278, 0.0, %v275
        %v284 = vsel %vm278, %v277, 0.0
        %v285 = vsel %vm263, 1, 0
        %v286 = vsel %vm264, 1, 0
        %vm287 = vcmp.eq.s32.totalorder %v285, 1
        %vm288 = vcmp.eq.s32.totalorder %v286, 1
        %v289 = vsel %vm287, %v283, 0.0
        %v290 = vsel %vm288, %v279, 0.0
        %v291 = vsel %vm265, 1, 0
        %v292 = vsel %vm266, 1, 0
        %vm293 = vcmp.eq.s32.totalorder %v291, 1
        %vm294 = vcmp.eq.s32.totalorder %v292, 1
        %297 = vrot.lane.b32.xlu0 %v283, 126
        %v298 = vpop.permute.xlu0 %297
        %299 = vrot.lane.b32.xlu0 %v279, 126
        %v300 = vpop.permute.xlu0 %299
        %301 = vrot.lane.b32.xlu0 %v284, 126
        %v302 = vpop.permute.xlu0 %301
        %vm303 = vcmask 1031168
        %v304 = vsel %vm303, %v298, %v300
        %v305 = vsel %vm303, %v300, %v302
        %v308 = vsel %vm293, %v304, 0.0
        %v309 = vsel %vm294, %v305, 0.0
        %310 = vrot.lane.b32.xlu0 %v283, 112
        %v311 = vpop.permute.xlu0 %310
        %312 = vrot.lane.b32.xlu0 %v279, 112
        %v313 = vpop.permute.xlu0 %312
        %314 = vrot.lane.b32.xlu0 %v284, 112
        %v315 = vpop.permute.xlu0 %314
        %vm316 = vcmask 916480
        %v317 = vsel %vm316, %v311, %v313
        %v318 = vsel %vm316, %v313, %v315
        %v321 = vsel %vm287, %v317, 0.0
        %v322 = vsel %vm288, %v318, 0.0
        %323 = vrot.lane.b32.xlu0 %v283, 110
        %v324 = vpop.permute.xlu0 %323
        %325 = vrot.lane.b32.xlu0 %v279, 110
        %v326 = vpop.permute.xlu0 %325
        %327 = vrot.lane.b32.xlu0 %v284, 110
        %v328 = vpop.permute.xlu0 %327
        %vm329 = vcmask 900096
        %v330 = vsel %vm329, %v324, %v326
        %v331 = vsel %vm329, %v326, %v328
        %v334 = vsel %vm293, %v330, 0.0
        %v335 = vsel %vm294, %v331, 0.0
        %336 = vrot.lane.b32.xlu0 %v283, 96
        %v337 = vpop.permute.xlu0 %336
        %338 = vrot.lane.b32.xlu0 %v279, 96
        %v339 = vpop.permute.xlu0 %338
        %340 = vrot.lane.b32.xlu0 %v284, 96
        %v341 = vpop.permute.xlu0 %340
        %vm342 = vcmask 785408
        %v343 = vsel %vm342, %v337, %v339
        %v344 = vsel %vm342, %v339, %v341
        %v347 = vsel %vm287, %v343, 0.0
        %v348 = vsel %vm288, %v344, 0.0
        %349 = vrot.lane.b32.xlu0 %v283, 94
        %v350 = vpop.permute.xlu0 %349
        %351 = vrot.lane.b32.xlu0 %v279, 94
        %v352 = vpop.permute.xlu0 %351
        %353 = vrot.lane.b32.xlu0 %v284, 94
        %v354 = vpop.permute.xlu0 %353
        %vm355 = vcmask 769024
        %v356 = vsel %vm355, %v350, %v352
        %v357 = vsel %vm355, %v352, %v354
        %v360 = vsel %vm293, %v356, 0.0
        %v361 = vsel %vm294, %v357, 0.0
        %v362 = vrot.slane %v283, 4
        %v363 = vrot.slane %v279, 4
        %v364 = vrot.slane %v284, 4
        %365 = vrot.lane.b32.xlu0 %v362, 127
        %v366 = vpop.permute.xlu0 %365
        %367 = vrot.lane.b32.xlu0 %v363, 127
        %v368 = vpop.permute.xlu0 %367
        %369 = vrot.lane.b32.xlu0 %v364, 127
        %v370 = vpop.permute.xlu0 %369
        %vm371 = vcmask 1039360
        %v372 = vsel %vm371, %v366, %v368
        %v373 = vsel %vm371, %v368, %v370
        %v378 = vrot.slane %v321, 4
        %v379 = vrot.slane %v322, 4
        %382 = vrot.lane.b32.xlu0 %v283, 111
        %v383 = vpop.permute.xlu0 %382
        %384 = vrot.lane.b32.xlu0 %v279, 111
        %v385 = vpop.permute.xlu0 %384
        %386 = vrot.lane.b32.xlu0 %v284, 111
        %v387 = vpop.permute.xlu0 %386
        %vm388 = vcmask 908288
        %v389 = vsel %vm388, %v383, %v385
        %v390 = vsel %vm388, %v385, %v387
        %v395 = vrot.slane %v334, 4
        %v396 = vrot.slane %v335, 4
        %399 = vrot.lane.b32.xlu0 %v362, 95
        %v400 = vpop.permute.xlu0 %399
        %401 = vrot.lane.b32.xlu0 %v363, 95
        %v402 = vpop.permute.xlu0 %401
        %403 = vrot.lane.b32.xlu0 %v364, 95
        %v404 = vpop.permute.xlu0 %403
        %vm405 = vcmask 777216
        %v406 = vsel %vm405, %v400, %v402
        %v407 = vsel %vm405, %v402, %v404
        %vm410 = vcmask 1043456
        %v411 = vsel %vm410, %v289, %v372
        %v412 = vsel %vm410, %v290, %v373
        %v413 = vsel %vm410, %v308, %v378
        %v414 = vsel %vm410, %v309, %v379
        %v415 = vsel %vm410, %v389, %v395
        %v416 = vsel %vm410, %v390, %v396
        %v417 = vsel %vm410, %v347, %v406
        %v418 = vsel %vm410, %v348, %v407
        %420 = vset.pattern.permute.xlu0 0
        %421 = vperm.xlu0 %420, %v268
        %v422 = vpop.permute.xlu0 %421
        %vm424 = vcmask 293888
        %v426 = vsel %vm424, %v267, 0
        %v429 = vsel %vm410, %v360, 0
        %v432 = vsel %vm410, %v361, 0
        %434 = vmatprep.subr.mxu0 %v412
        %435 = vmatpush1.msra.mxu0 %v411
        %436 = vmatprep.subr.mxu0 %v414
        %437 = vmatpush1.msra.mxu0 %v413
        %438 = vmatprep.subr.mxu0 %v416
        %439 = vmatpush1.msra.mxu0 %v415
        %440 = vmatprep.subr.mxu0 %v418
        %441 = vmatpush1.msra.mxu0 %v417
        %442 = vmatprep.subr.mxu0 %v432
        %443 = vmatpush1.msra.mxu0 %v429
        %444 = vmatprep.subr.mxu0 0.0
        %445 = vmatpush1.msra.mxu0 0.0
        %446 = vmatprep.subr.mxu0 0.0
        %447 = vmatpush1.msra.mxu0 0.0
        %448 = vmatprep.subr.mxu0 0.0
        %449 = vmatpush1.msra.mxu0 0.0
        %450 = vmatprep.subr.mxu0 0.0
        %451 = vmatpush1.msra.mxu0 0.0
        %452 = vmatprep.subr.mxu0 0.0
        %453 = vmatpush1.msra.mxu0 0.0
        %454 = vmatprep.subr.mxu0 0.0
        %455 = vmatpush1.msra.mxu0 0.0
        %456 = vmatprep.subr.mxu0 0.0
        %457 = vmatpush1.msra.mxu0 0.0
        %458 = vmatprep.subr.mxu0 0.0
        %459 = vmatpush1.msra.mxu0 0.0
        %460 = vmatprep.subr.mxu0 0.0
        %461 = vmatpush1.msra.mxu0 0.0
        %462 = vmatprep.subr.mxu0 0.0
        %463 = vmatpush1.msra.mxu0 0.0
        %464 = vmatprep.subr.mxu0 0.0
        %465 = vmatpush1.msra.mxu0 0.0
        %466 = vmatprep.subr.mxu0 0.0
        %467 = vmatpush1.msra.mxu0 0.0
        %468 = vmatprep.subr.mxu0 0.0
        %469 = vmatpush1.msra.mxu0 0.0
        %470 = vmatprep.subr.mxu0 0.0
        %471 = vmatpush1.msra.mxu0 0.0
        %472 = vmatprep.subr.mxu0 0.0
        %473 = vmatpush1.msra.mxu0 0.0
        %474 = vmatprep.subr.mxu0 0.0
        %475 = vmatpush1.msra.mxu0 0.0
        %476 = vmatprep.subr.mxu0 0.0
        %477 = vmatpush1.msra.mxu0 0.0
        %478 = vmatprep.subr.mxu0 0.0
        %479 = vmatpush1.msra.mxu0 0.0
        %480 = vmatprep.subr.mxu0 0.0
        %481 = vmatpush1.msra.mxu0 0.0
        %482 = vmatprep.subr.mxu0 0.0
        %483 = vmatpush1.msra.mxu0 0.0
        %484 = vmatprep.subr.mxu0 0.0
        %485 = vmatpush1.msra.mxu0 0.0
        %486 = vmatprep.subr.mxu0 0.0
        %487 = vmatpush1.msra.mxu0 0.0
        %488 = vmatprep.subr.mxu0 0.0
        %489 = vmatpush1.msra.mxu0 0.0
        %490 = vmatprep.subr.mxu0 0.0
        %491 = vmatpush1.msra.mxu0 0.0
        %492 = vmatprep.subr.mxu0 0.0
        %493 = vmatpush1.msra.mxu0 0.0
        %494 = vmatprep.subr.mxu0 0.0
        %495 = vmatpush1.msra.mxu0 0.0
        %496 = vmatprep.subr.mxu0 0.0
        %497 = vmatpush1.msra.mxu0 0.0
        %498 = vmatprep.mubr.f32.mxu0 0.0
        %499 = vmatmul.mubr.f32.gmra.mrb[0].mxu0 %v426
        %v500 = vpop.f32.mrb[0].mxu0
        %v501 = vadd.f32 %v422, %v500
        %v502 = vpop.f32.mrb[0].mxu0
        %v503 = vadd.f32 %v422, %v502
        %504 = vdwg.mxu0
        %v505 = vmul.f32 %v501, 0.5
        %v506 = vmul.f32 %v503, 0.5
        %v507 = vmul.f32 %v501, 0.70710677
        %v508 = vmul.f32 %v503, 0.70710677
        %vm509 = vcmp.ge.f32.partialorder %v507, 0.0
        %vm510 = vcmp.ge.f32.partialorder %v508, 0.0
        %v511 = vsel %vm509, 1.0, -1.0
        %v512 = vsel %vm510, 1.0, -1.0
        %v513 = vand.u32 2147483647, %v507
        %v514 = vand.u32 2147483647, %v508
        %v515 = vmul.f32 %v513, 0.3275911
        %v516 = vmul.f32 %v514, 0.3275911
        %v517 = vadd.f32 %v515, 1.0
        %v518 = vadd.f32 %v516, 1.0
        %v519 = vrcp.pop %v517
        %v520 = vmul.f32 1.0, %v519
        %v521 = vrcp.pop %v518
        %v522 = vmul.f32 1.0, %v521
        %v523 = vmul.f32 %v520, 1.0614054
        %v524 = vmul.f32 %v522, 1.0614054
        %v525 = vadd.f32 %v523, -1.4531521
        %v526 = vadd.f32 %v524, -1.4531521
        %v527 = vmul.f32 %v525, %v520
        %v528 = vmul.f32 %v526, %v522
        %v529 = vadd.f32 %v527, 1.4214138
        %v530 = vadd.f32 %v528, 1.4214138
        %v531 = vmul.f32 %v529, %v520
        %v532 = vmul.f32 %v530, %v522
        %v533 = vadd.f32 %v531, -0.28449672
        %v534 = vadd.f32 %v532, -0.28449672
        %v535 = vmul.f32 %v533, %v520
        %v536 = vmul.f32 %v534, %v522
        %v537 = vadd.f32 %v535, 0.2548296
        %v538 = vadd.f32 %v536, 0.2548296
        %v539 = vmul.f32 %v537, %v520
        %v540 = vmul.f32 %v538, %v522
        %v541 = vsub.f32 0.0, %v513
        %v542 = vsub.f32 0.0, %v514
        %v543 = vmul.f32 %v541, %v513
        %v544 = vmul.f32 %v542, %v514
        %v545 = vmul.f32 %v543, 1.442695
        %v546 = vpow.pop %v545
        %v547 = vmul.f32 %v544, 1.442695
        %v548 = vpow.pop %v547
        %v549 = vmul.f32 %v539, %v546
        %v550 = vmul.f32 %v540, %v548
        %v551 = vsub.f32 1.0, %v549
        %v552 = vsub.f32 1.0, %v550
        %v553 = vmul.f32 %v511, %v551
        %v554 = vmul.f32 %v512, %v552
        %v555 = vadd.f32 %v553, 1.0
        %v556 = vadd.f32 %v554, 1.0
        %v557 = vmul.f32 %v505, %v555
        %v558 = vmul.f32 %v506, %v556
        %561 = vrot.lane.b32.xlu0 %v557, 17
        %v562 = vpop.permute.xlu0 %561
        %563 = vrot.lane.b32.xlu0 %v558, 17
        %v564 = vpop.permute.xlu0 %563
        %v565 = vsel %vm278, %v562, %v564
        %v569 = vsel %vm278, 0.0, %v562
        %v570 = vsel %vm278, %v564, 0.0
        %v571 = vsel %vm287, %v569, 0.0
        %v572 = vsel %vm288, %v565, 0.0
        %575 = vrot.lane.b32.xlu0 %v569, 126
        %v576 = vpop.permute.xlu0 %575
        %577 = vrot.lane.b32.xlu0 %v565, 126
        %v578 = vpop.permute.xlu0 %577
        %579 = vrot.lane.b32.xlu0 %v570, 126
        %v580 = vpop.permute.xlu0 %579
        %v581 = vsel %vm303, %v576, %v578
        %v582 = vsel %vm303, %v578, %v580
        %v585 = vsel %vm293, %v581, 0.0
        %v586 = vsel %vm294, %v582, 0.0
        %587 = vrot.lane.b32.xlu0 %v569, 112
        %v588 = vpop.permute.xlu0 %587
        %589 = vrot.lane.b32.xlu0 %v565, 112
        %v590 = vpop.permute.xlu0 %589
        %591 = vrot.lane.b32.xlu0 %v570, 112
        %v592 = vpop.permute.xlu0 %591
        %v593 = vsel %vm316, %v588, %v590
        %v594 = vsel %vm316, %v590, %v592
        %v597 = vsel %vm287, %v593, 0.0
        %v598 = vsel %vm288, %v594, 0.0
        %599 = vrot.lane.b32.xlu0 %v569, 110
        %v600 = vpop.permute.xlu0 %599
        %601 = vrot.lane.b32.xlu0 %v565, 110
        %v602 = vpop.permute.xlu0 %601
        %603 = vrot.lane.b32.xlu0 %v570, 110
        %v604 = vpop.permute.xlu0 %603
        %v605 = vsel %vm329, %v600, %v602
        %v606 = vsel %vm329, %v602, %v604
        %v609 = vsel %vm293, %v605, 0.0
        %v610 = vsel %vm294, %v606, 0.0
        %611 = vrot.lane.b32.xlu0 %v569, 96
        %v612 = vpop.permute.xlu0 %611
        %613 = vrot.lane.b32.xlu0 %v565, 96
        %v614 = vpop.permute.xlu0 %613
        %615 = vrot.lane.b32.xlu0 %v570, 96
        %v616 = vpop.permute.xlu0 %615
        %v617 = vsel %vm342, %v612, %v614
        %v618 = vsel %vm342, %v614, %v616
        %v621 = vsel %vm287, %v617, 0.0
        %v622 = vsel %vm288, %v618, 0.0
        %623 = vrot.lane.b32.xlu0 %v569, 94
        %v624 = vpop.permute.xlu0 %623
        %625 = vrot.lane.b32.xlu0 %v565, 94
        %v626 = vpop.permute.xlu0 %625
        %627 = vrot.lane.b32.xlu0 %v570, 94
        %v628 = vpop.permute.xlu0 %627
        %v629 = vsel %vm355, %v624, %v626
        %v630 = vsel %vm355, %v626, %v628
        %v633 = vsel %vm293, %v629, 0.0
        %v634 = vsel %vm294, %v630, 0.0
        %635 = vrot.lane.b32.xlu0 %v569, 127
        %v636 = vpop.permute.xlu0 %635
        %637 = vrot.lane.b32.xlu0 %v565, 127
        %v638 = vpop.permute.xlu0 %637
        %639 = vrot.lane.b32.xlu0 %v570, 127
        %v640 = vpop.permute.xlu0 %639
        %v641 = vsel %vm371, %v636, %v638
        %v642 = vsel %vm371, %v638, %v640
        %645 = vrot.lane.b32.xlu0 %v569, 111
        %v646 = vpop.permute.xlu0 %645
        %647 = vrot.lane.b32.xlu0 %v565, 111
        %v648 = vpop.permute.xlu0 %647
        %649 = vrot.lane.b32.xlu0 %v570, 111
        %v650 = vpop.permute.xlu0 %649
        %v651 = vsel %vm388, %v646, %v648
        %v652 = vsel %vm388, %v648, %v650
        %655 = vrot.lane.b32.xlu0 %v569, 95
        %v656 = vpop.permute.xlu0 %655
        %657 = vrot.lane.b32.xlu0 %v565, 95
        %v658 = vpop.permute.xlu0 %657
        %659 = vrot.lane.b32.xlu0 %v570, 95
        %v660 = vpop.permute.xlu0 %659
        %v661 = vsel %vm405, %v656, %v658
        %v662 = vsel %vm405, %v658, %v660
        %666 = vset.pattern.permute.xlu0 0
        %667 = vperm.xlu0 %666, %v270
        %v668 = vpop.permute.xlu0 %667
        %vm670 = vcmask 588800
        %v672 = vsel %vm670, %v269, 0
        %674 = vmatprep.subr.mxu0 %v572
        %675 = vmatpush1.msra.mxu0 %v571
        %676 = vmatprep.subr.mxu0 %v642
        %677 = vmatpush1.msra.mxu0 %v641
        %678 = vmatprep.subr.mxu0 %v586
        %679 = vmatpush1.msra.mxu0 %v585
        %680 = vmatprep.subr.mxu0 %v598
        %681 = vmatpush1.msra.mxu0 %v597
        %682 = vmatprep.subr.mxu0 %v652
        %683 = vmatpush1.msra.mxu0 %v651
        %684 = vmatprep.subr.mxu0 %v610
        %685 = vmatpush1.msra.mxu0 %v609
        %686 = vmatprep.subr.mxu0 %v622
        %687 = vmatpush1.msra.mxu0 %v621
        %688 = vmatprep.subr.mxu0 %v662
        %689 = vmatpush1.msra.mxu0 %v661
        %690 = vmatprep.subr.mxu0 %v634
        %691 = vmatpush1.msra.mxu0 %v633
        %692 = vmatprep.subr.mxu0 0.0
        %693 = vmatpush1.msra.mxu0 0.0
        %694 = vmatprep.subr.mxu0 0.0
        %695 = vmatpush1.msra.mxu0 0.0
        %696 = vmatprep.subr.mxu0 0.0
        %697 = vmatpush1.msra.mxu0 0.0
        %698 = vmatprep.subr.mxu0 0.0
        %699 = vmatpush1.msra.mxu0 0.0
        %700 = vmatprep.subr.mxu0 0.0
        %701 = vmatpush1.msra.mxu0 0.0
        %702 = vmatprep.subr.mxu0 0.0
        %703 = vmatpush1.msra.mxu0 0.0
        %704 = vmatprep.subr.mxu0 0.0
        %705 = vmatpush1.msra.mxu0 0.0
        %706 = vmatprep.subr.mxu0 0.0
        %707 = vmatpush1.msra.mxu0 0.0
        %708 = vmatprep.subr.mxu0 0.0
        %709 = vmatpush1.msra.mxu0 0.0
        %710 = vmatprep.subr.mxu0 0.0
        %711 = vmatpush1.msra.mxu0 0.0
        %712 = vmatprep.subr.mxu0 0.0
        %713 = vmatpush1.msra.mxu0 0.0
        %714 = vmatprep.subr.mxu0 0.0
        %715 = vmatpush1.msra.mxu0 0.0
        %716 = vmatprep.subr.mxu0 0.0
        %717 = vmatpush1.msra.mxu0 0.0
        %718 = vmatprep.subr.mxu0 0.0
        %719 = vmatpush1.msra.mxu0 0.0
        %720 = vmatprep.subr.mxu0 0.0
        %721 = vmatpush1.msra.mxu0 0.0
        %722 = vmatprep.subr.mxu0 0.0
        %723 = vmatpush1.msra.mxu0 0.0
        %724 = vmatprep.subr.mxu0 0.0
        %725 = vmatpush1.msra.mxu0 0.0
        %726 = vmatprep.subr.mxu0 0.0
        %727 = vmatpush1.msra.mxu0 0.0
        %728 = vmatprep.subr.mxu0 0.0
        %729 = vmatpush1.msra.mxu0 0.0
        %730 = vmatprep.subr.mxu0 0.0
        %731 = vmatpush1.msra.mxu0 0.0
        %732 = vmatprep.subr.mxu0 0.0
        %733 = vmatpush1.msra.mxu0 0.0
        %734 = vmatprep.subr.mxu0 0.0
        %735 = vmatpush1.msra.mxu0 0.0
        %736 = vmatprep.subr.mxu0 0.0
        %737 = vmatpush1.msra.mxu0 0.0
        %738 = vmatprep.mubr.f32.mxu0 0.0
        %739 = vmatmul.mubr.f32.gmra.mrb[0].mxu0 %v672
        %v740 = vpop.f32.mrb[0].mxu0
        %v741 = vadd.f32 %v668, %v740
        %v742 = vpop.f32.mrb[0].mxu0
        %v743 = vadd.f32 %v668, %v742
        %744 = vdwg.mxu0
        %v745 = vmul.f32 %v741, 0.5
        %v746 = vmul.f32 %v743, 0.5
        %v747 = vmul.f32 %v741, 0.70710677
        %v748 = vmul.f32 %v743, 0.70710677
        %vm749 = vcmp.ge.f32.partialorder %v747, 0.0
        %vm750 = vcmp.ge.f32.partialorder %v748, 0.0
        %v751 = vsel %vm749, 1.0, -1.0
        %v752 = vsel %vm750, 1.0, -1.0
        %v753 = vand.u32 2147483647, %v747
        %v754 = vand.u32 2147483647, %v748
        %v755 = vmul.f32 %v753, 0.3275911
        %v756 = vmul.f32 %v754, 0.3275911
        %v757 = vadd.f32 %v755, 1.0
        %v758 = vadd.f32 %v756, 1.0
        %v759 = vrcp.pop %v757
        %v760 = vmul.f32 1.0, %v759
        %v761 = vrcp.pop %v758
        %v762 = vmul.f32 1.0, %v761
        %v763 = vmul.f32 %v760, 1.0614054
        %v764 = vmul.f32 %v762, 1.0614054
        %v765 = vadd.f32 %v763, -1.4531521
        %v766 = vadd.f32 %v764, -1.4531521
        %v767 = vmul.f32 %v765, %v760
        %v768 = vmul.f32 %v766, %v762
        %v769 = vadd.f32 %v767, 1.4214138
        %v770 = vadd.f32 %v768, 1.4214138
        %v771 = vmul.f32 %v769, %v760
        %v772 = vmul.f32 %v770, %v762
        %v773 = vadd.f32 %v771, -0.28449672
        %v774 = vadd.f32 %v772, -0.28449672
        %v775 = vmul.f32 %v773, %v760
        %v776 = vmul.f32 %v774, %v762
        %v777 = vadd.f32 %v775, 0.2548296
        %v778 = vadd.f32 %v776, 0.2548296
        %v779 = vmul.f32 %v777, %v760
        %v780 = vmul.f32 %v778, %v762
        %v781 = vsub.f32 0.0, %v753
        %v782 = vsub.f32 0.0, %v754
        %v783 = vmul.f32 %v781, %v753
        %v784 = vmul.f32 %v782, %v754
        %v785 = vmul.f32 %v783, 1.442695
        %v786 = vpow.pop %v785
        %v787 = vmul.f32 %v784, 1.442695
        %v788 = vpow.pop %v787
        %v789 = vmul.f32 %v779, %v786
        %v790 = vmul.f32 %v780, %v788
        %v791 = vsub.f32 1.0, %v789
        %v792 = vsub.f32 1.0, %v790
        %v793 = vmul.f32 %v751, %v791
        %v794 = vmul.f32 %v752, %v792
        %v795 = vadd.f32 %v793, 1.0
        %v796 = vadd.f32 %v794, 1.0
        %v797 = vmul.f32 %v745, %v795
        %v798 = vmul.f32 %v746, %v796
        %802 = vrot.lane.b32.xlu0 %v797, 127
        %v803 = vpop.permute.xlu0 %802
        %804 = vrot.lane.b32.xlu0 %v798, 127
        %v805 = vpop.permute.xlu0 %804
        %806 = vrot.lane.b32.xlu0 0.0, 127
        %v807 = vpop.permute.xlu0 %806
        %v808 = vsel %vm371, %v803, %v805
        %v809 = vsel %vm371, %v805, %v807
        %v812 = vmax.f32 %v797, %v808
        %v813 = vmax.f32 %v798, %v809
        %v815 = vmax.f32 %v807, 0.0
        %819 = vrot.lane.b32.xlu0 %v812, 112
        %v820 = vpop.permute.xlu0 %819
        %821 = vrot.lane.b32.xlu0 %v813, 112
        %v822 = vpop.permute.xlu0 %821
        %823 = vrot.lane.b32.xlu0 %v815, 112
        %v824 = vpop.permute.xlu0 %823
        %v825 = vsel %vm316, %v820, %v822
        %v826 = vsel %vm316, %v822, %v824
        %v829 = vmax.f32 %v812, %v825
        %v830 = vmax.f32 %v813, %v826
        %831 = vst [vmem:[%s230] sm:$0xff] %v829
        %832 = vst [vmem:[%s230 + $0x8] sm:$0xff] %v830
        %s833 = sand.u32 %s138, 1
        %s834 = scalar_lea.sflag [#allocation4], %s833
        %s835 = sand.u32 %s138, 1
        %s836 = smul.addr %s835, 16
        %s837 = scalar_lea.vmem [#allocation5], %s836
        // Predicated region
        $region45: #{tpu_custom_call.1} parent=39 // pred_check
          %p838 = pneg %p148
        $region46: #{tpu_custom_call.1} parent=39 // pred_check_branch
          %840 = sbr.rel (%p838) target = $region48
        $region47: #{tpu_custom_call.1} parent=39 // pred_region
          %s842 = ssub.s32 256, 256
          %843 = vsyncadd %s834, %s842
          %s844 = smul.addr %s20, 2
          %s845 = smul.addr %s844, 128
          %s846 = scalar_lea.hbm %s5, %s845
          %s848 = sshll.u32 %s837, 4
          %s849 = int_to_ptr.vmem [resolvable:$true] %s848
          %851 = dma.vmem_to_hbm [thread:$0]  %s849, 256, %s846, %s834
        $region48: #{tpu_custom_call.1} parent=39 // pred_fallthru
          _
      $region40: #{tpu_custom_call.1} parent=5 // pred_fallthru
        _
      %p852 = scmp.le.s32.totalorder 2, %s15
      // Predicated region
      $region49: #{tpu_custom_call.1} parent=5 // pred_check
        %p853 = pneg %p852
      $region50: #{tpu_custom_call.1} parent=5 // pred_check_branch
        %855 = sbr.rel (%p853) target = $region52
      $region51: #{tpu_custom_call.1} parent=5 // pred_region
        %s856 = ssub.s32 %s15, 2
        // Predicated region
        $region53: #{tpu_custom_call.1} parent=51 // pred_check
          %p857 = pneg %p154
        $region54: #{tpu_custom_call.1} parent=51 // pred_check_branch
          %859 = sbr.rel (%p857) target = $region56
        $region55: #{tpu_custom_call.1} parent=51 // pred_region
          %s860 = sand.u32 %s139, 1
          %s861 = scalar_lea.sflag [#allocation4], %s860
          %s862 = sand.u32 %s139, 1
          %s863 = smul.addr %s862, 16
          %s864 = scalar_lea.vmem [#allocation5], %s863
          %865 = dma.done %s861, 256
        $region56: #{tpu_custom_call.1} parent=51 // pred_fallthru
          _
      $region52: #{tpu_custom_call.1} parent=5 // pred_fallthru
        _
    $region6: #{tpu_custom_call.1} parent=1 // loop_footer
      %s19 = sadd.s32 1, %s15
    $region7: #{tpu_custom_call.1} parent=1 // loop_footer_branch
      %14 = sbr.rel target = $region3
    $region8: #{tpu_custom_call.1} parent=1 // loop_exit
      _
    %866 = vsyncpa [#allocation3], 1
    %s867 = scalar_lea.sflag [#allocation3], 1
    %868 = vsyncpa %s867, 1
    %869 = vsyncpa [#allocation4], 1
    %s870 = scalar_lea.sflag [#allocation4], 1
    %871 = vsyncpa %s870, 1

</llo_original>
